<compile_context>
chip_gen: v6e
topology: v6e:2x2x1
jax: 0.10.0
libtpu: 0.0.40
codegen_flags: <defaults>
</compile_context>

<pallas_src>
import math
import functools

import jax
import jax.numpy as jnp
from jax.experimental import pallas as pl
from jax.experimental.pallas import tpu as pltpu


# ---------------------------------------------------------------------------
# Tiling helpers
# ---------------------------------------------------------------------------
def _pick_tile(dim, cap, align):
    """Largest power-of-two tile <= cap (>= align) that divides dim, else the
    full dim. Guarantees every block is either hardware-aligned or covers the
    whole axis, so the (8, 128) BlockSpec constraint is always satisfied and
    the grid divides exactly (no ragged K-blocks corrupting the reduction)."""
    if dim <= cap:
        return dim
    t = cap
    while t >= align:
        if dim % t == 0:
            return t
        t //= 2
    return dim


# Tile caps chosen so (wmu + wsig) double-buffered f32 tiles stay ~4 MiB,
# comfortably inside v5e (16 MiB scoped) and v7x (64 MiB physical) budgets.
_TM_CAP, _TN_CAP, _TK_CAP = 256, 512, 512


# ---------------------------------------------------------------------------
# Pallas kernels
# ---------------------------------------------------------------------------
def _noisy_linear_train_kernel(x_ref, wmu_ref, wsig_ref, eps_in_ref, eps_out_ref,
                               bmu_ref, bsig_ref, beps_ref, o_ref, acc_ref):
    k = pl.program_id(2)

    @pl.when(k == 0)
    def _():
        acc_ref[...] = jnp.zeros_like(acc_ref)

    x = x_ref[...]                                   # (tm, tk)
    # Fold the factorized input-noise into the activations: O(tm*tk) VPU work
    # instead of O(tk*tn) for building the noisy weight tile.
    xn = x * eps_in_ref[...]                         # (tm, tk) * (1, tk)
    part_mu = jnp.dot(x, wmu_ref[...], preferred_element_type=jnp.float32)
    part_sig = jnp.dot(xn, wsig_ref[...], preferred_element_type=jnp.float32)
    # eps_out is lane-dense (1, tn): the scale rides for free on the VPU.
    acc_ref[...] += part_mu + eps_out_ref[...] * part_sig

    @pl.when(k == pl.num_programs(2) - 1)
    def _():
        bias = bmu_ref[...] + bsig_ref[...] * beps_ref[...]   # (1, tn)
        o_ref[...] = (acc_ref[...] + bias).astype(o_ref.dtype)


def _linear_eval_kernel(x_ref, wmu_ref, bmu_ref, o_ref, acc_ref):
    k = pl.program_id(2)

    @pl.when(k == 0)
    def _():
        acc_ref[...] = jnp.zeros_like(acc_ref)

    acc_ref[...] += jnp.dot(x_ref[...], wmu_ref[...],
                            preferred_element_type=jnp.float32)

    @pl.when(k == pl.num_programs(2) - 1)
    def _():
        o_ref[...] = (acc_ref[...] + bmu_ref[...]).astype(o_ref.dtype)


# ---------------------------------------------------------------------------
# Wrapper
# ---------------------------------------------------------------------------
@functools.partial(jax.jit, static_argnames=("training",))
def noisy_linear_forward(x, params, training=True):
    """params: dict with weight_mu (O,I), weight_sigma (O,I), bias_mu (O,),
    bias_sigma (O,), weight_epsilon_input (I,), weight_epsilon_output (O,),
    bias_epsilon (O,).  x: (B, I).  Returns (B, O)."""
    B, K = x.shape
    O = params["weight_mu"].shape[0]
    out_shape = jax.ShapeDtypeStruct((B, O), x.dtype)

    tm = _pick_tile(B, _TM_CAP, 8)
    tn = _pick_tile(O, _TN_CAP, 128)
    tk = _pick_tile(K, _TK_CAP, 128)
    grid = (B // tm, O // tn, K // tk)

    # Present weights as (I, O) so the matmul is a plain (B,K)@(K,N) with a
    # lane-dense N output (no per-tile transposed-operand layout work).
    # In a real training loop you would store the params pre-transposed.
    wmu_t = params["weight_mu"].T
    wdtype = wmu_t.dtype

    wbytes = jnp.dtype(wdtype).itemsize
    xbytes = jnp.dtype(x.dtype).itemsize

    common_compiler = dict(
        dimension_semantics=("parallel", "parallel", "arbitrary"),
    )

    if training:
        wsig_t = params["weight_sigma"].T
        # Lane-dense (1, N)/(1, K) rows — no (O, 1) sublane-padded layouts.
        eps_in = params["weight_epsilon_input"].reshape(1, K)
        eps_out = params["weight_epsilon_output"].reshape(1, O)
        bmu = params["bias_mu"].reshape(1, O)
        bsig = params["bias_sigma"].reshape(1, O)
        beps = params["bias_epsilon"].reshape(1, O)

        # VMEM budget from the tile plan (double-buffered inputs/outputs + acc).
        tile_bytes = (2 * 2 * tk * tn * wbytes        # wmu_t + wsig_t
                      + 2 * tm * tk * xbytes          # x
                      + 2 * tm * tn * xbytes          # out
                      + tm * tn * 4                   # f32 accumulator
                      + 2 * (tk + 4 * tn) * 4)        # small (1,*) vectors
        vmem_limit = int(min(max(2 * tile_bytes, 4 << 20), 48 << 20))

        cost = pl.CostEstimate(
            flops=4 * B * O * K + 4 * B * O,
            transcendentals=0,
            bytes_accessed=(2 * O * K * wbytes + B * K * xbytes
                            + B * O * xbytes + (4 * O + K) * 4),
        )

        # NOTE: on v7x one could additionally pass pipeline_mode=pl.Buffered(3)
        # on the weight-streaming BlockSpecs; default double-buffering is used
        # here for maximum compatibility.
        return pl.pallas_call(
            _noisy_linear_train_kernel,
            out_shape=out_shape,
            grid_spec=pltpu.PrefetchScalarGridSpec(
                num_scalar_prefetch=0,
                grid=grid,
                in_specs=[
                    pl.BlockSpec((tm, tk), lambda i, j, k: (i, k)),   # x
                    pl.BlockSpec((tk, tn), lambda i, j, k: (k, j)),   # weight_mu^T
                    pl.BlockSpec((tk, tn), lambda i, j, k: (k, j)),   # weight_sigma^T
                    pl.BlockSpec((1, tk), lambda i, j, k: (0, k)),    # eps_in
                    pl.BlockSpec((1, tn), lambda i, j, k: (0, j)),    # eps_out
                    pl.BlockSpec((1, tn), lambda i, j, k: (0, j)),    # bias_mu
                    pl.BlockSpec((1, tn), lambda i, j, k: (0, j)),    # bias_sigma
                    pl.BlockSpec((1, tn), lambda i, j, k: (0, j)),    # bias_eps
                ],
                out_specs=pl.BlockSpec((tm, tn), lambda i, j, k: (i, j)),
                scratch_shapes=[pltpu.VMEM((tm, tn), jnp.float32)],
            ),
            compiler_params=pltpu.CompilerParams(
                vmem_limit_bytes=vmem_limit, **common_compiler),
            cost_estimate=cost,
        )(x, wmu_t, wsig_t, eps_in, eps_out, bmu, bsig, beps)
    else:
        bmu = params["bias_mu"].reshape(1, O)

        tile_bytes = (2 * tk * tn * wbytes
                      + 2 * tm * tk * xbytes
                      + 2 * tm * tn * xbytes
                      + tm * tn * 4
                      + 2 * tn * 4)
        vmem_limit = int(min(max(2 * tile_bytes, 4 << 20), 48 << 20))

        cost = pl.CostEstimate(
            flops=2 * B * O * K + B * O,
            transcendentals=0,
            bytes_accessed=(O * K * wbytes + B * K * xbytes
                            + B * O * xbytes + O * 4),
        )

        return pl.pallas_call(
            _linear_eval_kernel,
            out_shape=out_shape,
            grid_spec=pltpu.PrefetchScalarGridSpec(
                num_scalar_prefetch=0,
                grid=grid,
                in_specs=[
                    pl.BlockSpec((tm, tk), lambda i, j, k: (i, k)),   # x
                    pl.BlockSpec((tk, tn), lambda i, j, k: (k, j)),   # weight_mu^T
                    pl.BlockSpec((1, tn), lambda i, j, k: (0, j)),    # bias_mu
                ],
                out_specs=pl.BlockSpec((tm, tn), lambda i, j, k: (i, j)),
                scratch_shapes=[pltpu.VMEM((tm, tn), jnp.float32)],
            ),
            compiler_params=pltpu.CompilerParams(
                vmem_limit_bytes=vmem_limit, **common_compiler),
            cost_estimate=cost,
        )(x, wmu_t, bmu)


# ---------------------------------------------------------------------------
# Parameter / noise initialization (mirrors reset_parameters / reset_noise of
# the PyTorch module, using JAX RNG instead of torch RNG).
# ---------------------------------------------------------------------------
def _scale_noise(key, size):
    x = jax.random.normal(key, (size,), dtype=jnp.float32)
    return jnp.sign(x) * jnp.sqrt(jnp.abs(x))


def init_noisy_linear(key, in_features, out_features, std_init=0.5):
    k_wmu, k_bmu, k_ein, k_eout, k_beps = jax.random.split(key, 5)
    std = math.sqrt(3.0 / in_features)
    params = {
        "weight_mu": jax.random.uniform(
            k_wmu, (out_features, in_features), jnp.float32, -std, std),
        "bias_mu": jax.random.uniform(
            k_bmu, (out_features,), jnp.float32, -std, std),
        "weight_sigma": jnp.full((out_features, in_features),
                                 std_init / math.sqrt(in_features), jnp.float32),
        "bias_sigma": jnp.full((out_features,),
                               std_init / math.sqrt(out_features), jnp.float32),
        # factorized noise buffers
        "weight_epsilon_input": _scale_noise(k_ein, in_features),
        "weight_epsilon_output": _scale_noise(k_eout, out_features),
        "bias_epsilon": _scale_noise(k_beps, out_features),
    }
    return params


# ---------------------------------------------------------------------------
# Reference (pure JAX) for correctness check
# ---------------------------------------------------------------------------
def noisy_linear_ref(x, p, training=True):
    if training:
        w = p["weight_mu"] + p["weight_sigma"] * jnp.outer(
            p["weight_epsilon_output"], p["weight_epsilon_input"])
        b = p["bias_mu"] + p["bias_sigma"] * p["bias_epsilon"]
    else:
        w, b = p["weight_mu"], p["bias_mu"]
    return x @ w.T + b


if __name__ == "__main__":
    key = jax.random.PRNGKey(0)

    # --- small shape, grid (1,1,1) ------------------------------------------
    k_params, k_x, k2_params, k2_x = jax.random.split(key, 4)
    in_features, out_features, batch = 32, 64, 8
    params = init_noisy_linear(k_params, in_features, out_features, std_init=0.5)
    x = jax.random.normal(k_x, (batch, in_features), dtype=jnp.float32)

    y_train = jax.block_until_ready(noisy_linear_forward(x, params, training=True))
    ref_train = noisy_linear_ref(x, params, training=True)
    assert jnp.allclose(y_train, ref_train, atol=1e-5, rtol=1e-5), "train mismatch"

    y_eval = jax.block_until_ready(noisy_linear_forward(x, params, training=False))
    ref_eval = noisy_linear_ref(x, params, training=False)
    assert jnp.allclose(y_eval, ref_eval, atol=1e-5, rtol=1e-5), "eval mismatch"

    # --- larger shape, exercises the tiled grid + K-reduction pipeline -------
    in2, out2, b2 = 1024, 1024, 16
    params2 = init_noisy_linear(k2_params, in2, out2, std_init=0.5)
    x2 = jax.random.normal(k2_x, (b2, in2), dtype=jnp.float32)

    y2 = jax.block_until_ready(noisy_linear_forward(x2, params2, training=True))
    ref2 = noisy_linear_ref(x2, params2, training=True)
    assert jnp.allclose(y2, ref2, atol=1e-4, rtol=1e-4), "tiled train mismatch"

    # TODO(synk): for production NoisyNet (tiny B), amortize weight streaming by
    # batching several forward calls / layers into a single pallas_call.
    print("KERNEL_OK")
</pallas_src>

<mosaic_0001>
module attributes {stable_mosaic.version = 11 : i64} {
  func.func @_noisy_linear_train_kernel(%arg0: i32, %arg1: i32, %arg2: i32, %arg3: memref<8x32xf32, #tpu.memory_space<vmem>>, %arg4: memref<32x64xf32, #tpu.memory_space<vmem>>, %arg5: memref<32x64xf32, #tpu.memory_space<vmem>>, %arg6: memref<1x32xf32, #tpu.memory_space<vmem>>, %arg7: memref<1x64xf32, #tpu.memory_space<vmem>>, %arg8: memref<1x64xf32, #tpu.memory_space<vmem>>, %arg9: memref<1x64xf32, #tpu.memory_space<vmem>>, %arg10: memref<1x64xf32, #tpu.memory_space<vmem>>, %arg11: memref<8x64xf32, #tpu.memory_space<vmem>>, %arg12: memref<8x64xf32, #tpu.memory_space<vmem>>) attributes {dimension_semantics = [#tpu.dimension_semantics<parallel>, #tpu.dimension_semantics<parallel>, #tpu.dimension_semantics<arbitrary>], iteration_bounds = array<i64: 1, 1, 1>, scalar_prefetch = 0 : i64, scratch_operands = 1 : i64, tpu.core_type = #tpu.core_type<tc>, window_params = [{transform_indices = @transform_0, window_bounds = array<i64: 8, 32>}, {transform_indices = @transform_1, window_bounds = array<i64: 32, 64>}, {transform_indices = @transform_2, window_bounds = array<i64: 32, 64>}, {transform_indices = @transform_3, window_bounds = array<i64: 1, 32>}, {transform_indices = @transform_4, window_bounds = array<i64: 1, 64>}, {transform_indices = @transform_5, window_bounds = array<i64: 1, 64>}, {transform_indices = @transform_6, window_bounds = array<i64: 1, 64>}, {transform_indices = @transform_7, window_bounds = array<i64: 1, 64>}, {transform_indices = @transform_8, window_bounds = array<i64: 8, 64>}]} {
    %c0_i32 = arith.constant 0 : i32
    %0 = arith.cmpi eq, %arg2, %c0_i32 : i32
    %1 = arith.extui %0 : i1 to i32
    %c0_i32_0 = arith.constant 0 : i32
    %2 = arith.cmpi ne, %1, %c0_i32_0 : i32
    scf.if %2 {
      %cst_17 = arith.constant 0.000000e+00 : f32
      %21 = vector.broadcast %cst_17 : f32 to vector<8x64xf32>
      %c0_18 = arith.constant 0 : index
      %c0_19 = arith.constant 0 : index
      %22 = vector.load %arg12[%c0_18, %c0_19] : memref<8x64xf32, #tpu.memory_space<vmem>>, vector<8x64xf32>
      tpu.vector_store %arg12[%c0_18, %c0_19], %21 {strides = array<i32>} : memref<8x64xf32, #tpu.memory_space<vmem>>, vector<8x64xf32>,
    } else {
    }
    %c0 = arith.constant 0 : index
    %c0_1 = arith.constant 0 : index
    %3 = vector.load %arg3[%c0, %c0_1] : memref<8x32xf32, #tpu.memory_space<vmem>>, vector<8x32xf32>
    %c0_2 = arith.constant 0 : index
    %c0_3 = arith.constant 0 : index
    %4 = vector.load %arg6[%c0_2, %c0_3] : memref<1x32xf32, #tpu.memory_space<vmem>>, vector<1x32xf32>
    %5 = vector.broadcast %4 : vector<1x32xf32> to vector<8x32xf32>
    %6 = arith.mulf %3, %5 : vector<8x32xf32>
    %c0_4 = arith.constant 0 : index
    %c0_5 = arith.constant 0 : index
    %7 = vector.load %arg4[%c0_4, %c0_5] : memref<32x64xf32, #tpu.memory_space<vmem>>, vector<32x64xf32>
    %cst = arith.constant dense<0.000000e+00> : vector<8x64xf32>
    %8 = tpu.matmul %3, %7, %cst {dimension_numbers = #tpu.dot_dimension_numbers<[1], [0], [0], [1], [0, 0, 1, 1], [], []>} : vector<8x32xf32>, vector<32x64xf32>, vector<8x64xf32> -> vector<8x64xf32>
    %c0_6 = arith.constant 0 : index
    %c0_7 = arith.constant 0 : index
    %9 = vector.load %arg5[%c0_6, %c0_7] : memref<32x64xf32, #tpu.memory_space<vmem>>, vector<32x64xf32>
    %cst_8 = arith.constant dense<0.000000e+00> : vector<8x64xf32>
    %10 = tpu.matmul %6, %9, %cst_8 {dimension_numbers = #tpu.dot_dimension_numbers<[1], [0], [0], [1], [0, 0, 1, 1], [], []>} : vector<8x32xf32>, vector<32x64xf32>, vector<8x64xf32> -> vector<8x64xf32>
    %c0_9 = arith.constant 0 : index
    %c0_10 = arith.constant 0 : index
    %11 = vector.load %arg12[%c0_9, %c0_10] : memref<8x64xf32, #tpu.memory_space<vmem>>, vector<8x64xf32>
    %c0_11 = arith.constant 0 : index
    %c0_12 = arith.constant 0 : index
    %12 = vector.load %arg7[%c0_11, %c0_12] : memref<1x64xf32, #tpu.memory_space<vmem>>, vector<1x64xf32>
    %13 = vector.broadcast %12 : vector<1x64xf32> to vector<8x64xf32>
    %14 = arith.mulf %13, %10 : vector<8x64xf32>
    %15 = arith.addf %8, %14 : vector<8x64xf32>
    %16 = arith.addf %11, %15 : vector<8x64xf32>
    %c0_13 = arith.constant 0 : index
    %c0_14 = arith.constant 0 : index
    %17 = vector.load %arg12[%c0_13, %c0_14] : memref<8x64xf32, #tpu.memory_space<vmem>>, vector<8x64xf32>
    tpu.vector_store %arg12[%c0_13, %c0_14], %16 {strides = array<i32>} : memref<8x64xf32, #tpu.memory_space<vmem>>, vector<8x64xf32>,
    %c0_i32_15 = arith.constant 0 : i32
    %18 = arith.cmpi eq, %arg2, %c0_i32_15 : i32
    %19 = arith.extui %18 : i1 to i32
    %c0_i32_16 = arith.constant 0 : i32
    %20 = arith.cmpi ne, %19, %c0_i32_16 : i32
    scf.if %20 {
      %c0_17 = arith.constant 0 : index
      %c0_18 = arith.constant 0 : index
      %21 = vector.load %arg8[%c0_17, %c0_18] : memref<1x64xf32, #tpu.memory_space<vmem>>, vector<1x64xf32>
      %c0_19 = arith.constant 0 : index
      %c0_20 = arith.constant 0 : index
      %22 = vector.load %arg9[%c0_19, %c0_20] : memref<1x64xf32, #tpu.memory_space<vmem>>, vector<1x64xf32>
      %c0_21 = arith.constant 0 : index
      %c0_22 = arith.constant 0 : index
      %23 = vector.load %arg10[%c0_21, %c0_22] : memref<1x64xf32, #tpu.memory_space<vmem>>, vector<1x64xf32>
      %24 = arith.mulf %22, %23 : vector<1x64xf32>
      %25 = arith.addf %21, %24 : vector<1x64xf32>
      %c0_23 = arith.constant 0 : index
      %c0_24 = arith.constant 0 : index
      %26 = vector.load %arg12[%c0_23, %c0_24] : memref<8x64xf32, #tpu.memory_space<vmem>>, vector<8x64xf32>
      %27 = vector.broadcast %25 : vector<1x64xf32> to vector<8x64xf32>
      %28 = arith.addf %26, %27 : vector<8x64xf32>
      %c0_25 = arith.constant 0 : index
      %c0_26 = arith.constant 0 : index
      %29 = vector.load %arg11[%c0_25, %c0_26] : memref<8x64xf32, #tpu.memory_space<vmem>>, vector<8x64xf32>
      tpu.vector_store %arg11[%c0_25, %c0_26], %28 {strides = array<i32>} : memref<8x64xf32, #tpu.memory_space<vmem>>, vector<8x64xf32>,
    } else {
    }
    return
  }
  func.func @transform_0(%arg0: i32, %arg1: i32, %arg2: i32) -> (i32, i32) {
    %c0_i32 = arith.constant 0 : i32
    return %arg0, %arg2 : i32, i32
  }
  func.func @transform_1(%arg0: i32, %arg1: i32, %arg2: i32) -> (i32, i32) {
    %c0_i32 = arith.constant 0 : i32
    return %arg2, %arg1 : i32, i32
  }
  func.func @transform_2(%arg0: i32, %arg1: i32, %arg2: i32) -> (i32, i32) {
    %c0_i32 = arith.constant 0 : i32
    return %arg2, %arg1 : i32, i32
  }
  func.func @transform_3(%arg0: i32, %arg1: i32, %arg2: i32) -> (i32, i32) {
    %c0_i32 = arith.constant 0 : i32
    %c0_i32_0 = arith.constant 0 : i32
    return %c0_i32, %arg2 : i32, i32
  }
  func.func @transform_4(%arg0: i32, %arg1: i32, %arg2: i32) -> (i32, i32) {
    %c0_i32 = arith.constant 0 : i32
    %c0_i32_0 = arith.constant 0 : i32
    return %c0_i32, %arg1 : i32, i32
  }
  func.func @transform_5(%arg0: i32, %arg1: i32, %arg2: i32) -> (i32, i32) {
    %c0_i32 = arith.constant 0 : i32
    %c0_i32_0 = arith.constant 0 : i32
    return %c0_i32, %arg1 : i32, i32
  }
  func.func @transform_6(%arg0: i32, %arg1: i32, %arg2: i32) -> (i32, i32) {
    %c0_i32 = arith.constant 0 : i32
    %c0_i32_0 = arith.constant 0 : i32
    return %c0_i32, %arg1 : i32, i32
  }
  func.func @transform_7(%arg0: i32, %arg1: i32, %arg2: i32) -> (i32, i32) {
    %c0_i32 = arith.constant 0 : i32
    %c0_i32_0 = arith.constant 0 : i32
    return %c0_i32, %arg1 : i32, i32
  }
  func.func @transform_8(%arg0: i32, %arg1: i32, %arg2: i32) -> (i32, i32) {
    %c0_i32 = arith.constant 0 : i32
    return %arg0, %arg1 : i32, i32
  }
}

</mosaic_0001>

<llo_original>
// kernel: noisy_linear_forward.1
$region0: #{noisy_linear_forward.1}
  #allocation0 [shape = 'u32[]', space=smem, size = 0x4, offset = 0x4, fixed_abs, tag = 'smem constant byte address 0x4 - core index']
  #allocation1 [shape = 'u32[144,128]{1,0:T(1,128)}', space=vmem, size = 0x12000, scoped, tag = 'internal scratch']
  #allocation2 [shape = 'f32[8,64]{1,0:T(8,128)}', space=vmem, size = 0x1000, scoped, tag = 'scratch operand']
  %s0 = inlined_call_operand.vmem [shape: f32[8,32], index: 0, kind: input, shape index: {}]
  %s1 = inlined_call_operand.hbm [shape: f32[32,64], index: 1, kind: input, shape index: {}]
  %s2 = inlined_call_operand.hbm [shape: f32[32,64], index: 2, kind: input, shape index: {}]
  %s3 = inlined_call_operand.vmem [shape: f32[1,32], index: 3, kind: input, shape index: {}]
  %s4 = inlined_call_operand.vmem [shape: f32[1,64], index: 4, kind: input, shape index: {}]
  %s5 = inlined_call_operand.vmem [shape: f32[1,64], index: 5, kind: input, shape index: {}]
  %s6 = inlined_call_operand.vmem [shape: f32[1,64], index: 6, kind: input, shape index: {}]
  %s7 = inlined_call_operand.vmem [shape: f32[1,64], index: 7, kind: input, shape index: {}]
  %s8 = inlined_call_operand.hbm [shape: f32[8,64], index: 8, kind: output, shape index: {}]
  %s9 = sld [smem:[#allocation0]]
  $region58: #{noisy_linear_forward.1} parent=0
    _
  %s11 = ssub.s32 1, %s9
  %s12 = scalar_select 0, %s11, %s9
  $region1: #{noisy_linear_forward.1} parent=0
    #allocation3 [shape = 'u8[16384]{0}', space=vmem, size = 0x4000, scoped, tag = 'input window, operand 1, single buffered']
    #allocation4 [shape = 's32[1]{0}', space=sflag, size = 0x4, scoped, tag = 'scoped memory for noisy_linear_forward.1']
    #allocation5 [shape = 's32[1]{0}', space=sflag, size = 0x4, scoped, tag = 'scoped memory for noisy_linear_forward.1']
    #allocation6 [shape = 'u8[16384]{0}', space=vmem, size = 0x4000, scoped, tag = 'input window, operand 2, single buffered']
    #allocation7 [shape = 's32[1]{0}', space=sflag, size = 0x4, scoped, tag = 'scoped memory for noisy_linear_forward.1']
    #allocation8 [shape = 'u8[4096]{0}', space=vmem, size = 0x1000, scoped, tag = 'output window, operand 0, single buffered']
    %13 = vsyncpa [#allocation4], 0
    %14 = vsyncpa [#allocation7], 0
    %15 = vsyncpa [#allocation5], 0
    // Predicated region
    $region2: #{noisy_linear_forward.1} parent=1 // pred_check
      _
    $region3: #{noisy_linear_forward.1} parent=1 // pred_check_branch
      %17 = sbr.rel (0) target = $region5
    $region4: #{noisy_linear_forward.1} parent=1 // pred_region
      _
    $region5: #{noisy_linear_forward.1} parent=1 // pred_fallthru
      _
    // Predicated region
    $region6: #{noisy_linear_forward.1} parent=1 // pred_check
      _
    $region7: #{noisy_linear_forward.1} parent=1 // pred_check_branch
      %19 = sbr.rel (0) target = $region9
    $region8: #{noisy_linear_forward.1} parent=1 // pred_region
      %s21 = ssub.s32 512, 512
      %22 = vsyncadd [#allocation4], %s21
      %s23 = sshll.u32 [#allocation3], 4
      %s24 = int_to_ptr.vmem [resolvable:$true] %s23
      %29 = dma.hbm_to_vmem [thread:$0]  %s1, 512, %s24, [#allocation4], 128, 128, 8
    $region9: #{noisy_linear_forward.1} parent=1 // pred_fallthru
      _
    // Predicated region
    $region10: #{noisy_linear_forward.1} parent=1 // pred_check
      _
    $region11: #{noisy_linear_forward.1} parent=1 // pred_check_branch
      %31 = sbr.rel (0) target = $region13
    $region12: #{noisy_linear_forward.1} parent=1 // pred_region
      %s33 = ssub.s32 512, 512
      %34 = vsyncadd [#allocation7], %s33
      %s35 = sshll.u32 [#allocation6], 4
      %s36 = int_to_ptr.vmem [resolvable:$true] %s35
      %41 = dma.hbm_to_vmem [thread:$0]  %s2, 512, %s36, [#allocation7], 128, 128, 8
    $region13: #{noisy_linear_forward.1} parent=1 // pred_fallthru
      _
    // Predicated region
    $region14: #{noisy_linear_forward.1} parent=1 // pred_check
      _
    $region15: #{noisy_linear_forward.1} parent=1 // pred_check_branch
      %43 = sbr.rel (0) target = $region17
    $region16: #{noisy_linear_forward.1} parent=1 // pred_region
      _
    $region17: #{noisy_linear_forward.1} parent=1 // pred_fallthru
      _
    // Predicated region
    $region18: #{noisy_linear_forward.1} parent=1 // pred_check
      _
    $region19: #{noisy_linear_forward.1} parent=1 // pred_check_branch
      %45 = sbr.rel (0) target = $region21
    $region20: #{noisy_linear_forward.1} parent=1 // pred_region
      _
    $region21: #{noisy_linear_forward.1} parent=1 // pred_fallthru
      _
    // Predicated region
    $region22: #{noisy_linear_forward.1} parent=1 // pred_check
      _
    $region23: #{noisy_linear_forward.1} parent=1 // pred_check_branch
      %47 = sbr.rel (0) target = $region25
    $region24: #{noisy_linear_forward.1} parent=1 // pred_region
      _
    $region25: #{noisy_linear_forward.1} parent=1 // pred_fallthru
      _
    // Predicated region
    $region26: #{noisy_linear_forward.1} parent=1 // pred_check
      _
    $region27: #{noisy_linear_forward.1} parent=1 // pred_check_branch
      %49 = sbr.rel (0) target = $region29
    $region28: #{noisy_linear_forward.1} parent=1 // pred_region
      _
    $region29: #{noisy_linear_forward.1} parent=1 // pred_fallthru
      _
    // Predicated region
    $region30: #{noisy_linear_forward.1} parent=1 // pred_check
      _
    $region31: #{noisy_linear_forward.1} parent=1 // pred_check_branch
      %51 = sbr.rel (0) target = $region33
    $region32: #{noisy_linear_forward.1} parent=1 // pred_region
      _
    $region33: #{noisy_linear_forward.1} parent=1 // pred_fallthru
      _
    // Predicated region
    $region34: #{noisy_linear_forward.1} parent=1 // pred_check
      _
    $region35: #{noisy_linear_forward.1} parent=1 // pred_check_branch
      %53 = sbr.rel (0) target = $region37
    $region36: #{noisy_linear_forward.1} parent=1 // pred_region
      %54 = dma.done [#allocation4], 512
    $region37: #{noisy_linear_forward.1} parent=1 // pred_fallthru
      _
    // Predicated region
    $region38: #{noisy_linear_forward.1} parent=1 // pred_check
      _
    $region39: #{noisy_linear_forward.1} parent=1 // pred_check_branch
      %56 = sbr.rel (0) target = $region41
    $region40: #{noisy_linear_forward.1} parent=1 // pred_region
      %57 = dma.done [#allocation7], 512
    $region41: #{noisy_linear_forward.1} parent=1 // pred_fallthru
      _
    %p58 = scmp.eq.s32.totalorder 0, 0
    // Predicated region
    $region42: #{noisy_linear_forward.1} parent=1 // pred_check
      %p59 = pneg %p58
    $region43: #{noisy_linear_forward.1} parent=1 // pred_check_branch
      %61 = sbr.rel (%p59) target = $region45
    $region44: #{noisy_linear_forward.1} parent=1 // pred_region
      %vm62 = vcmask 523264
      %63 = vst.msk [vmem:[#allocation2] sm:$0xff] %vm62, 0.0
    $region45: #{noisy_linear_forward.1} parent=1 // pred_fallthru
      _
    %v64 = vld [vmem:[%s0] sm:$0xff]
    %v65 = vld [vmem:[%s3] sm:$0x1]
    %v67 = vlaneseq
    %v68 = vshrl.u32 %v67, 7
    %v69 = vsub.s32 0, %v68
    %v70 = vrot.slane %v65, %v69
    %v72 = vmul.f32 %v64, %v70
    %v73 = vld [vmem:[#allocation3] sm:$0xff]
    %v74 = vld [vmem:[#allocation3 + $0x8] sm:$0xff]
    %v75 = vld [vmem:[#allocation3 + $0x10] sm:$0xff]
    %v76 = vld [vmem:[#allocation3 + $0x18] sm:$0xff]
    %v77 = vld [vmem:[#allocation6] sm:$0xff]
    %v78 = vld [vmem:[#allocation6 + $0x8] sm:$0xff]
    %v79 = vld [vmem:[#allocation6 + $0x10] sm:$0xff]
    %v80 = vld [vmem:[#allocation6 + $0x18] sm:$0xff]
    %vm81 = vcmask 261120
    %v83 = vsel %vm81, %v72, 0
    %85 = vmatprep.subr.mxu0 0.0
    %86 = vmatpush1.msra.mxu0 0.0
    %87 = vmatprep.subr.mxu0 0.0
    %88 = vmatpush1.msra.mxu0 0.0
    %89 = vmatprep.subr.mxu0 0.0
    %90 = vmatpush1.msra.mxu0 0.0
    %91 = vmatprep.subr.mxu0 0.0
    %92 = vmatpush1.msra.mxu0 0.0
    %93 = vmatprep.subr.mxu0 0.0
    %94 = vmatpush1.msra.mxu0 0.0
    %95 = vmatprep.subr.mxu0 0.0
    %96 = vmatpush1.msra.mxu0 0.0
    %97 = vmatprep.subr.mxu0 0.0
    %98 = vmatpush1.msra.mxu0 0.0
    %99 = vmatprep.subr.mxu0 0.0
    %100 = vmatpush1.msra.mxu0 0.0
    %101 = vmatprep.subr.mxu0 0.0
    %102 = vmatpush1.msra.mxu0 0.0
    %103 = vmatprep.subr.mxu0 0.0
    %104 = vmatpush1.msra.mxu0 0.0
    %105 = vmatprep.subr.mxu0 0.0
    %106 = vmatpush1.msra.mxu0 0.0
    %107 = vmatprep.subr.mxu0 0.0
    %108 = vmatpush1.msra.mxu0 0.0
    %109 = vmatprep.subr.mxu0 0.0
    %110 = vmatpush1.msra.mxu0 %v80
    %111 = vmatprep.subr.mxu0 0.0
    %112 = vmatpush1.msra.mxu0 %v79
    %113 = vmatprep.subr.mxu0 0.0
    %114 = vmatpush1.msra.mxu0 %v78
    %115 = vmatprep.subr.mxu0 0.0
    %116 = vmatpush1.msra.mxu0 %v77
    %117 = vmatprep.subr.mxu0 0.0
    %118 = vmatpush2.msra.mxu0 0.0
    %119 = vmatprep.subr.mxu0 0.0
    %120 = vmatpush2.msra.mxu0 0.0
    %121 = vmatprep.subr.mxu0 0.0
    %122 = vmatpush2.msra.mxu0 0.0
    %123 = vmatprep.subr.mxu0 0.0
    %124 = vmatpush2.msra.mxu0 0.0
    %125 = vmatprep.subr.mxu0 0.0
    %126 = vmatpush2.msra.mxu0 0.0
    %127 = vmatprep.subr.mxu0 0.0
    %128 = vmatpush2.msra.mxu0 0.0
    %129 = vmatprep.subr.mxu0 0.0
    %130 = vmatpush2.msra.mxu0 0.0
    %131 = vmatprep.subr.mxu0 0.0
    %132 = vmatpush2.msra.mxu0 0.0
    %133 = vmatprep.subr.mxu0 0.0
    %134 = vmatpush2.msra.mxu0 0.0
    %135 = vmatprep.subr.mxu0 0.0
    %136 = vmatpush2.msra.mxu0 0.0
    %137 = vmatprep.subr.mxu0 0.0
    %138 = vmatpush2.msra.mxu0 0.0
    %139 = vmatprep.subr.mxu0 0.0
    %140 = vmatpush2.msra.mxu0 0.0
    %141 = vmatprep.subr.mxu0 0.0
    %142 = vmatpush2.msra.mxu0 0.0
    %143 = vmatprep.subr.mxu0 0.0
    %144 = vmatpush2.msra.mxu0 0.0
    %145 = vmatprep.subr.mxu0 0.0
    %146 = vmatpush2.msra.mxu0 0.0
    %147 = vmatprep.subr.mxu0 0.0
    %148 = vmatpush2.msra.mxu0 0.0
    %149 = vmatprep.mubr.f32.mxu0 0.0
    %150 = vmatmul.mubr.f32.gmra.mxu0 %v83
    %v151 = vpop.f32.mrf.mxu0
    %v152 = vadd.f32 0.0, %v151
    %v153 = vpop.f32.mrf.mxu0
    %154 = vdwg.mxu0
    %v155 = vld [vmem:[#allocation2] sm:$0xff]
    %v156 = vld [vmem:[%s4] sm:$0x1]
    %v158 = vlaneseq
    %v159 = vshrl.u32 %v158, 7
    %v160 = vsub.s32 0, %v159
    %v161 = vrot.slane %v156, %v160
    %v163 = vmul.f32 %v161, %v152
    %v165 = vsel %vm81, %v64, 0
    %167 = vmatprep.subr.mxu0 0.0
    %168 = vmatpush1.msra.mxu0 0.0
    %169 = vmatprep.subr.mxu0 0.0
    %170 = vmatpush1.msra.mxu0 0.0
    %171 = vmatprep.subr.mxu0 0.0
    %172 = vmatpush1.msra.mxu0 0.0
    %173 = vmatprep.subr.mxu0 0.0
    %174 = vmatpush1.msra.mxu0 0.0
    %175 = vmatprep.subr.mxu0 0.0
    %176 = vmatpush1.msra.mxu0 0.0
    %177 = vmatprep.subr.mxu0 0.0
    %178 = vmatpush1.msra.mxu0 0.0
    %179 = vmatprep.subr.mxu0 0.0
    %180 = vmatpush1.msra.mxu0 0.0
    %181 = vmatprep.subr.mxu0 0.0
    %182 = vmatpush1.msra.mxu0 0.0
    %183 = vmatprep.subr.mxu0 0.0
    %184 = vmatpush1.msra.mxu0 0.0
    %185 = vmatprep.subr.mxu0 0.0
    %186 = vmatpush1.msra.mxu0 0.0
    %187 = vmatprep.subr.mxu0 0.0
    %188 = vmatpush1.msra.mxu0 0.0
    %189 = vmatprep.subr.mxu0 0.0
    %190 = vmatpush1.msra.mxu0 0.0
    %191 = vmatprep.subr.mxu0 0.0
    %192 = vmatpush1.msra.mxu0 %v76
    %193 = vmatprep.subr.mxu0 0.0
    %194 = vmatpush1.msra.mxu0 %v75
    %195 = vmatprep.subr.mxu0 0.0
    %196 = vmatpush1.msra.mxu0 %v74
    %197 = vmatprep.subr.mxu0 0.0
    %198 = vmatpush1.msra.mxu0 %v73
    %199 = vmatprep.subr.mxu0 0.0
    %200 = vmatpush2.msra.mxu0 0.0
    %201 = vmatprep.subr.mxu0 0.0
    %202 = vmatpush2.msra.mxu0 0.0
    %203 = vmatprep.subr.mxu0 0.0
    %204 = vmatpush2.msra.mxu0 0.0
    %205 = vmatprep.subr.mxu0 0.0
    %206 = vmatpush2.msra.mxu0 0.0
    %207 = vmatprep.subr.mxu0 0.0
    %208 = vmatpush2.msra.mxu0 0.0
    %209 = vmatprep.subr.mxu0 0.0
    %210 = vmatpush2.msra.mxu0 0.0
    %211 = vmatprep.subr.mxu0 0.0
    %212 = vmatpush2.msra.mxu0 0.0
    %213 = vmatprep.subr.mxu0 0.0
    %214 = vmatpush2.msra.mxu0 0.0
    %215 = vmatprep.subr.mxu0 0.0
    %216 = vmatpush2.msra.mxu0 0.0
    %217 = vmatprep.subr.mxu0 0.0
    %218 = vmatpush2.msra.mxu0 0.0
    %219 = vmatprep.subr.mxu0 0.0
    %220 = vmatpush2.msra.mxu0 0.0
    %221 = vmatprep.subr.mxu0 0.0
    %222 = vmatpush2.msra.mxu0 0.0
    %223 = vmatprep.subr.mxu0 0.0
    %224 = vmatpush2.msra.mxu0 0.0
    %225 = vmatprep.subr.mxu0 0.0
    %226 = vmatpush2.msra.mxu0 0.0
    %227 = vmatprep.subr.mxu0 0.0
    %228 = vmatpush2.msra.mxu0 0.0
    %229 = vmatprep.subr.mxu0 0.0
    %230 = vmatpush2.msra.mxu0 0.0
    %231 = vmatprep.mubr.f32.mxu0 0.0
    %232 = vmatmul.mubr.f32.gmra.mxu0 %v165
    %v233 = vpop.f32.mrf.mxu0
    %v234 = vadd.f32 %v163, %v233
    %v235 = vpop.f32.mrf.mxu0
    %236 = vdwg.mxu0
    %v237 = vadd.f32 %v155, %v234
    %vm238 = vcmask 523264
    %239 = vst.msk [vmem:[#allocation2] sm:$0xff] %vm238, %v237
    // Predicated region
    $region46: #{noisy_linear_forward.1} parent=1 // pred_check
      %p240 = pneg %p58
    $region47: #{noisy_linear_forward.1} parent=1 // pred_check_branch
      %242 = sbr.rel (%p240) target = $region49
    $region48: #{noisy_linear_forward.1} parent=1 // pred_region
      %v243 = vld [vmem:[%s5] sm:$0x1]
      %v244 = vld [vmem:[%s6] sm:$0x1]
      %v245 = vld [vmem:[%s7] sm:$0x1]
      %v246 = vmul.f32 %v244, %v245
      %v247 = vadd.f32 %v243, %v246
      %v248 = vld [vmem:[#allocation2] sm:$0xff]
      %v250 = vlaneseq
      %v251 = vshrl.u32 %v250, 7
      %v252 = vsub.s32 0, %v251
      %v253 = vrot.slane %v247, %v252
      %v255 = vadd.f32 %v248, %v253
      %256 = vst.msk [vmem:[#allocation8] sm:$0xff] %vm238, %v255
    $region49: #{noisy_linear_forward.1} parent=1 // pred_fallthru
      _
    // Predicated region
    $region50: #{noisy_linear_forward.1} parent=1 // pred_check
      _
    $region51: #{noisy_linear_forward.1} parent=1 // pred_check_branch
      %258 = sbr.rel (0) target = $region53
    $region52: #{noisy_linear_forward.1} parent=1 // pred_region
      %s260 = ssub.s32 128, 128
      %261 = vsyncadd [#allocation5], %s260
      %s263 = sshll.u32 [#allocation8], 4
      %s264 = int_to_ptr.vmem [resolvable:$true] %s263
      %266 = dma.vmem_to_hbm [thread:$0]  %s264, 128, %s8, [#allocation5]
    $region53: #{noisy_linear_forward.1} parent=1 // pred_fallthru
      _
    // Predicated region
    $region54: #{noisy_linear_forward.1} parent=1 // pred_check
      _
    $region55: #{noisy_linear_forward.1} parent=1 // pred_check_branch
      %268 = sbr.rel (0) target = $region57
    $region56: #{noisy_linear_forward.1} parent=1 // pred_region
      %269 = dma.done [#allocation5], 128
    $region57: #{noisy_linear_forward.1} parent=1 // pred_fallthru
      _
    %270 = vsyncpa [#allocation4], 1
    %271 = vsyncpa [#allocation7], 1
    %272 = vsyncpa [#allocation5], 1

</llo_original>
